<compile_context>
chip_gen: v6e
topology: v6e:2x2x1
jax: 0.10.0
libtpu: 0.0.40
codegen_flags: <defaults>
</compile_context>

<pallas_src>
import functools

import jax
import jax.numpy as jnp
from jax.experimental import pallas as pl
from jax.experimental.pallas import tpu as pltpu

LANE = 128


def _round_up(x, m):
    return (x + m - 1) // m * m


def _cdiv(a, b):
    return (a + b - 1) // b


def classifier_kernel(d_ref, inv_ref, w1d_ref, w1i_ref, b1_ref, w2_ref,
                      b2_ref, out_ref):
    """One batch block of the classifier.

    d_ref  : (bb, S)    discriminative inputs (ReLU applied in-kernel)
    inv_ref: (bb, L)    invariant inputs (no ReLU)
    w1d_ref: (S, Hp)    W1.T rows for the discriminative columns, H padded
    w1i_ref: (L, Hp)    W1.T rows for the invariant columns, H padded
    b1_ref : (1, Hp)    b1 zero-padded to Hp
    w2_ref : (Hp, C)    W2.T zero-padded on the hidden dim
    b2_ref : (1, C)     b2
    out_ref: (bb, C)    logits block (narrow, C = n_classes)
    """
    d = jnp.maximum(d_ref[...], 0.0)                      # branch-only ReLU
    h = jnp.dot(d, w1d_ref[...], preferred_element_type=jnp.float32)
    h = h + jnp.dot(inv_ref[...], w1i_ref[...],
                    preferred_element_type=jnp.float32)
    h = jnp.maximum(h + b1_ref[...], 0.0)                 # layer-1 ReLU
    out_ref[...] = (
        jnp.dot(h, w2_ref[...], preferred_element_type=jnp.float32)
        + b2_ref[...])


def prepare_classifier_params(params, specific):
    """One-time weight preprocessing (hoisted out of the per-call path).

    params: dict with PyTorch nn.Linear layouts
        w1: (hidden, specific + latent), b1: (hidden,)
        w2: (n_classes, hidden),         b2: (n_classes,)
    Returns (w1d, w1i, b1_pad, w2_pad, b2) ready for the kernel.
    """
    w1 = jnp.asarray(params["w1"], jnp.float32)
    b1 = jnp.asarray(params["b1"], jnp.float32)
    w2 = jnp.asarray(params["w2"], jnp.float32)
    b2 = jnp.asarray(params["b2"], jnp.float32)

    hidden = w1.shape[0]
    n_classes = w2.shape[0]
    h_pad = _round_up(hidden, LANE)

    w1t = w1.T                                             # (S+L, H)
    w1d = jnp.pad(w1t[:specific], ((0, 0), (0, h_pad - hidden)))   # (S, Hp)
    w1i = jnp.pad(w1t[specific:], ((0, 0), (0, h_pad - hidden)))   # (L, Hp)
    b1_pad = jnp.pad(b1[None, :], ((0, 0), (0, h_pad - hidden)))   # (1, Hp)
    w2_pad = jnp.pad(w2.T, ((0, h_pad - hidden), (0, 0)))          # (Hp, C)
    b2 = b2[None, :]                                                # (1, C)
    return w1d, w1i, b1_pad, w2_pad, b2


def _choose_block(B, block_b):
    """Pick a batch block size that balances padding and per-step overhead."""
    n_blocks = _cdiv(B, block_b)
    if B > 1024:
        # Keep >=2 grid steps so the parallel axis can use both v7x TCs.
        n_blocks = max(n_blocks, 2)
    bb = _round_up(_cdiv(B, n_blocks), 8)
    b_pad = _round_up(B, bb)
    return bb, b_pad


@functools.partial(jax.jit, static_argnames=("block_b",))
def classifier_forward(discriminative, invariant, w1d, w1i, b1_pad, w2_pad,
                       b2, *, block_b=4096):
    """Classifier forward pass as a single gridded pallas_call."""
    B, S = discriminative.shape
    L = invariant.shape[1]
    h_pad = w1d.shape[1]
    n_classes = w2_pad.shape[1]

    d = discriminative.astype(jnp.float32)
    inv = invariant.astype(jnp.float32)

    bb, b_pad = _choose_block(B, block_b)
    if b_pad != B:
        d = jnp.pad(d, ((0, b_pad - B), (0, 0)))
        inv = jnp.pad(inv, ((0, b_pad - B), (0, 0)))
    grid = (b_pad // bb,)

    out = pl.pallas_call(
        classifier_kernel,
        out_shape=jax.ShapeDtypeStruct((b_pad, n_classes), jnp.float32),
        grid=grid,
        in_specs=[
            pl.BlockSpec((bb, S), lambda i: (i, 0)),          # disc (per-block)
            pl.BlockSpec((bb, L), lambda i: (i, 0)),          # inv  (per-block)
            pl.BlockSpec((S, h_pad), lambda i: (0, 0)),       # W1_d (broadcast)
            pl.BlockSpec((L, h_pad), lambda i: (0, 0)),       # W1_i (broadcast)
            pl.BlockSpec((1, h_pad), lambda i: (0, 0)),       # b1   (broadcast)
            pl.BlockSpec((h_pad, n_classes), lambda i: (0, 0)),  # W2 (broadcast)
            pl.BlockSpec((1, n_classes), lambda i: (0, 0)),   # b2   (broadcast)
        ],
        out_specs=pl.BlockSpec((bb, n_classes), lambda i: (i, 0)),
        compiler_params=pltpu.CompilerParams(
            dimension_semantics=("parallel",)),
    )(d, inv, w1d, w1i, b1_pad, w2_pad, b2)

    # Batch-dim slice only; a no-op when B is already a multiple of bb.
    return out[:B]


def _reference(discriminative, invariant, params):
    d = jnp.maximum(discriminative, 0.0)
    x = jnp.concatenate([d, invariant], axis=1)
    h = jnp.maximum(x @ params["w1"].T + params["b1"], 0.0)
    return h @ params["w2"].T + params["b2"]


if __name__ == "__main__":
    # Small shapes consistent with the module:
    #   specific_shape=16, latent_shape=16, n_classes=10, hidden=40, batch=8
    B, S, L, H, C = 8, 16, 16, 40, 10

    key = jax.random.PRNGKey(0)
    k_d, k_i, k_w1, k_b1, k_w2, k_b2 = jax.random.split(key, 6)

    discriminative = jax.random.normal(k_d, (B, S), dtype=jnp.float32)
    invariant = jax.random.normal(k_i, (B, L), dtype=jnp.float32)

    bound1 = 1.0 / jnp.sqrt(S + L)
    bound2 = 1.0 / jnp.sqrt(H)
    params = {
        "w1": jax.random.uniform(k_w1, (H, S + L), jnp.float32, -bound1, bound1),
        "b1": jax.random.uniform(k_b1, (H,), jnp.float32, -bound1, bound1),
        "w2": jax.random.uniform(k_w2, (C, H), jnp.float32, -bound2, bound2),
        "b2": jax.random.uniform(k_b2, (C,), jnp.float32, -bound2, bound2),
    }

    # Weight preprocessing is done once, outside the per-call path.
    w1d, w1i, b1_pad, w2_pad, b2 = prepare_classifier_params(params, specific=S)

    logits = classifier_forward(discriminative, invariant,
                                w1d, w1i, b1_pad, w2_pad, b2)
    jax.block_until_ready(logits)

    ref = _reference(discriminative, invariant, params)
    assert logits.shape == (B, C)
    assert jnp.allclose(logits, ref, atol=2e-5, rtol=2e-5), "mismatch vs reference"

    print("KERNEL_OK")
</pallas_src>

<mosaic_0001>
module attributes {stable_mosaic.version = 11 : i64} {
  func.func @classifier_kernel(%arg0: i32, %arg1: memref<8x16xf32, #tpu.memory_space<vmem>>, %arg2: memref<8x16xf32, #tpu.memory_space<vmem>>, %arg3: memref<16x128xf32, #tpu.memory_space<vmem>>, %arg4: memref<16x128xf32, #tpu.memory_space<vmem>>, %arg5: memref<1x128xf32, #tpu.memory_space<vmem>>, %arg6: memref<128x10xf32, #tpu.memory_space<vmem>>, %arg7: memref<1x10xf32, #tpu.memory_space<vmem>>, %arg8: memref<8x10xf32, #tpu.memory_space<vmem>>) attributes {dimension_semantics = [#tpu.dimension_semantics<parallel>], iteration_bounds = array<i64: 1>, scalar_prefetch = 0 : i64, scratch_operands = 0 : i64, tpu.core_type = #tpu.core_type<tc>, window_params = [{transform_indices = @transform_0, window_bounds = array<i64: 8, 16>}, {transform_indices = @transform_1, window_bounds = array<i64: 8, 16>}, {pipeline_mode = #tpu.pipeline_mode<synchronous>, transform_indices = @transform_2, window_bounds = array<i64: 16, 128>}, {pipeline_mode = #tpu.pipeline_mode<synchronous>, transform_indices = @transform_3, window_bounds = array<i64: 16, 128>}, {pipeline_mode = #tpu.pipeline_mode<synchronous>, transform_indices = @transform_4, window_bounds = array<i64: 1, 128>}, {pipeline_mode = #tpu.pipeline_mode<synchronous>, transform_indices = @transform_5, window_bounds = array<i64: 128, 10>}, {pipeline_mode = #tpu.pipeline_mode<synchronous>, transform_indices = @transform_6, window_bounds = array<i64: 1, 10>}, {transform_indices = @transform_7, window_bounds = array<i64: 8, 10>}]} {
    %c0 = arith.constant 0 : index
    %c0_0 = arith.constant 0 : index
    %0 = vector.load %arg1[%c0, %c0_0] : memref<8x16xf32, #tpu.memory_space<vmem>>, vector<8x16xf32>
    %cst = arith.constant 0.000000e+00 : f32
    %1 = vector.broadcast %cst : f32 to vector<8x16xf32>
    %2 = arith.maximumf %0, %1 : vector<8x16xf32>
    %c0_1 = arith.constant 0 : index
    %c0_2 = arith.constant 0 : index
    %3 = vector.load %arg3[%c0_1, %c0_2] : memref<16x128xf32, #tpu.memory_space<vmem>>, vector<16x128xf32>
    %cst_3 = arith.constant dense<0.000000e+00> : vector<8x128xf32>
    %4 = tpu.matmul %2, %3, %cst_3 {dimension_numbers = #tpu.dot_dimension_numbers<[1], [0], [0], [1], [0, 0, 1, 1], [], []>} : vector<8x16xf32>, vector<16x128xf32>, vector<8x128xf32> -> vector<8x128xf32>
    %c0_4 = arith.constant 0 : index
    %c0_5 = arith.constant 0 : index
    %5 = vector.load %arg2[%c0_4, %c0_5] : memref<8x16xf32, #tpu.memory_space<vmem>>, vector<8x16xf32>
    %c0_6 = arith.constant 0 : index
    %c0_7 = arith.constant 0 : index
    %6 = vector.load %arg4[%c0_6, %c0_7] : memref<16x128xf32, #tpu.memory_space<vmem>>, vector<16x128xf32>
    %cst_8 = arith.constant dense<0.000000e+00> : vector<8x128xf32>
    %7 = tpu.matmul %5, %6, %cst_8 {dimension_numbers = #tpu.dot_dimension_numbers<[1], [0], [0], [1], [0, 0, 1, 1], [], []>} : vector<8x16xf32>, vector<16x128xf32>, vector<8x128xf32> -> vector<8x128xf32>
    %8 = arith.addf %4, %7 : vector<8x128xf32>
    %c0_9 = arith.constant 0 : index
    %c0_10 = arith.constant 0 : index
    %9 = vector.load %arg5[%c0_9, %c0_10] : memref<1x128xf32, #tpu.memory_space<vmem>>, vector<1x128xf32>
    %10 = vector.broadcast %9 : vector<1x128xf32> to vector<8x128xf32>
    %11 = arith.addf %8, %10 : vector<8x128xf32>
    %cst_11 = arith.constant 0.000000e+00 : f32
    %12 = vector.broadcast %cst_11 : f32 to vector<8x128xf32>
    %13 = arith.maximumf %11, %12 : vector<8x128xf32>
    %c0_12 = arith.constant 0 : index
    %c0_13 = arith.constant 0 : index
    %14 = vector.load %arg6[%c0_12, %c0_13] : memref<128x10xf32, #tpu.memory_space<vmem>>, vector<128x10xf32>
    %cst_14 = arith.constant dense<0.000000e+00> : vector<8x10xf32>
    %15 = tpu.matmul %13, %14, %cst_14 {dimension_numbers = #tpu.dot_dimension_numbers<[1], [0], [0], [1], [0, 0, 1, 1], [], []>} : vector<8x128xf32>, vector<128x10xf32>, vector<8x10xf32> -> vector<8x10xf32>
    %c0_15 = arith.constant 0 : index
    %c0_16 = arith.constant 0 : index
    %16 = vector.load %arg7[%c0_15, %c0_16] : memref<1x10xf32, #tpu.memory_space<vmem>>, vector<1x10xf32>
    %17 = vector.broadcast %16 : vector<1x10xf32> to vector<8x10xf32>
    %18 = arith.addf %15, %17 : vector<8x10xf32>
    %c0_17 = arith.constant 0 : index
    %c0_18 = arith.constant 0 : index
    %19 = vector.load %arg8[%c0_17, %c0_18] : memref<8x10xf32, #tpu.memory_space<vmem>>, vector<8x10xf32>
    tpu.vector_store %arg8[%c0_17, %c0_18], %18 {strides = array<i32>} : memref<8x10xf32, #tpu.memory_space<vmem>>, vector<8x10xf32>,
    return
  }
  func.func @transform_0(%arg0: i32) -> (i32, i32) {
    %c0_i32 = arith.constant 0 : i32
    %c0_i32_0 = arith.constant 0 : i32
    return %arg0, %c0_i32 : i32, i32
  }
  func.func @transform_1(%arg0: i32) -> (i32, i32) {
    %c0_i32 = arith.constant 0 : i32
    %c0_i32_0 = arith.constant 0 : i32
    return %arg0, %c0_i32 : i32, i32
  }
  func.func @transform_2(%arg0: i32) -> (i32, i32) {
    %c0_i32 = arith.constant 0 : i32
    %c0_i32_0 = arith.constant 0 : i32
    %c0_i32_1 = arith.constant 0 : i32
    return %c0_i32, %c0_i32_0 : i32, i32
  }
  func.func @transform_3(%arg0: i32) -> (i32, i32) {
    %c0_i32 = arith.constant 0 : i32
    %c0_i32_0 = arith.constant 0 : i32
    %c0_i32_1 = arith.constant 0 : i32
    return %c0_i32, %c0_i32_0 : i32, i32
  }
  func.func @transform_4(%arg0: i32) -> (i32, i32) {
    %c0_i32 = arith.constant 0 : i32
    %c0_i32_0 = arith.constant 0 : i32
    %c0_i32_1 = arith.constant 0 : i32
    return %c0_i32, %c0_i32_0 : i32, i32
  }
  func.func @transform_5(%arg0: i32) -> (i32, i32) {
    %c0_i32 = arith.constant 0 : i32
    %c0_i32_0 = arith.constant 0 : i32
    %c0_i32_1 = arith.constant 0 : i32
    return %c0_i32, %c0_i32_0 : i32, i32
  }
  func.func @transform_6(%arg0: i32) -> (i32, i32) {
    %c0_i32 = arith.constant 0 : i32
    %c0_i32_0 = arith.constant 0 : i32
    %c0_i32_1 = arith.constant 0 : i32
    return %c0_i32, %c0_i32_0 : i32, i32
  }
  func.func @transform_7(%arg0: i32) -> (i32, i32) {
    %c0_i32 = arith.constant 0 : i32
    %c0_i32_0 = arith.constant 0 : i32
    return %arg0, %c0_i32 : i32, i32
  }
}

</mosaic_0001>

<llo_original>
// kernel: classifier_forward.1
$region0: #{classifier_forward.1}
  #allocation0 [shape = 'u32[]', space=smem, size = 0x4, offset = 0x4, fixed_abs, tag = 'smem constant byte address 0x4 - core index']
  #allocation1 [shape = 'u32[144,128]{1,0:T(1,128)}', space=vmem, size = 0x12000, scoped, tag = 'internal scratch']
  %s0 = inlined_call_operand.vmem [shape: f32[8,16], index: 0, kind: input, shape index: {}]
  %s1 = inlined_call_operand.vmem [shape: f32[8,16], index: 1, kind: input, shape index: {}]
  %s2 = inlined_call_operand.vmem [shape: f32[16,128], index: 2, kind: input, shape index: {}]
  %s3 = inlined_call_operand.vmem [shape: f32[16,128], index: 3, kind: input, shape index: {}]
  %s4 = inlined_call_operand.vmem [shape: f32[1,128], index: 4, kind: input, shape index: {}]
  %s5 = inlined_call_operand.vmem [shape: f32[128,10], index: 5, kind: input, shape index: {}]
  %s6 = inlined_call_operand.vmem [shape: f32[1,10], index: 6, kind: input, shape index: {}]
  %s7 = inlined_call_operand.hbm [shape: f32[8,10], index: 7, kind: output, shape index: {}]
  %s8 = sld [smem:[#allocation0]]
  $region38: #{classifier_forward.1} parent=0
    _
  %s10 = ssub.s32 1, %s8
  %s11 = scalar_select 0, %s10, %s8
  $region1: #{classifier_forward.1} parent=0
    #allocation2 [shape = 'u8[4096]{0}', space=vmem, size = 0x1000, scoped, tag = 'output window, operand 0, single buffered']
    #allocation3 [shape = 's32[1]{0}', space=sflag, size = 0x4, scoped, tag = 'scoped memory for classifier_forward.1']
    %12 = vsyncpa [#allocation3], 0
    // Predicated region
    $region2: #{classifier_forward.1} parent=1 // pred_check
      _
    $region3: #{classifier_forward.1} parent=1 // pred_check_branch
      %14 = sbr.rel (0) target = $region5
    $region4: #{classifier_forward.1} parent=1 // pred_region
      _
    $region5: #{classifier_forward.1} parent=1 // pred_fallthru
      _
    // Predicated region
    $region6: #{classifier_forward.1} parent=1 // pred_check
      _
    $region7: #{classifier_forward.1} parent=1 // pred_check_branch
      %16 = sbr.rel (0) target = $region9
    $region8: #{classifier_forward.1} parent=1 // pred_region
      _
    $region9: #{classifier_forward.1} parent=1 // pred_fallthru
      _
    // Predicated region
    $region10: #{classifier_forward.1} parent=1 // pred_check
      _
    $region11: #{classifier_forward.1} parent=1 // pred_check_branch
      %18 = sbr.rel (0) target = $region13
    $region12: #{classifier_forward.1} parent=1 // pred_region
      _
    $region13: #{classifier_forward.1} parent=1 // pred_fallthru
      _
    // Predicated region
    $region14: #{classifier_forward.1} parent=1 // pred_check
      _
    $region15: #{classifier_forward.1} parent=1 // pred_check_branch
      %20 = sbr.rel (0) target = $region17
    $region16: #{classifier_forward.1} parent=1 // pred_region
      _
    $region17: #{classifier_forward.1} parent=1 // pred_fallthru
      _
    // Predicated region
    $region18: #{classifier_forward.1} parent=1 // pred_check
      _
    $region19: #{classifier_forward.1} parent=1 // pred_check_branch
      %22 = sbr.rel (0) target = $region21
    $region20: #{classifier_forward.1} parent=1 // pred_region
      _
    $region21: #{classifier_forward.1} parent=1 // pred_fallthru
      _
    // Predicated region
    $region22: #{classifier_forward.1} parent=1 // pred_check
      _
    $region23: #{classifier_forward.1} parent=1 // pred_check_branch
      %24 = sbr.rel (0) target = $region25
    $region24: #{classifier_forward.1} parent=1 // pred_region
      _
    $region25: #{classifier_forward.1} parent=1 // pred_fallthru
      _
    // Predicated region
    $region26: #{classifier_forward.1} parent=1 // pred_check
      _
    $region27: #{classifier_forward.1} parent=1 // pred_check_branch
      %26 = sbr.rel (0) target = $region29
    $region28: #{classifier_forward.1} parent=1 // pred_region
      _
    $region29: #{classifier_forward.1} parent=1 // pred_fallthru
      _
    %v27 = vld [vmem:[%s0] sm:$0xff]
    %v28 = vmax.f32 %v27, 0.0
    %v29 = vld [vmem:[%s2] sm:$0xff]
    %v30 = vld [vmem:[%s2 + $0x8] sm:$0xff]
    %v31 = vld [vmem:[%s1] sm:$0xff]
    %v32 = vld [vmem:[%s3] sm:$0xff]
    %v33 = vld [vmem:[%s3 + $0x8] sm:$0xff]
    %vm34 = vcmask 130048
    %v36 = vsel %vm34, %v31, 0
    %38 = vmatprep.subr.mxu0 0.0
    %39 = vmatpush1.msra.mxu0 0.0
    %40 = vmatprep.subr.mxu0 0.0
    %41 = vmatpush1.msra.mxu0 0.0
    %42 = vmatprep.subr.mxu0 0.0
    %43 = vmatpush1.msra.mxu0 0.0
    %44 = vmatprep.subr.mxu0 0.0
    %45 = vmatpush1.msra.mxu0 0.0
    %46 = vmatprep.subr.mxu0 0.0
    %47 = vmatpush1.msra.mxu0 0.0
    %48 = vmatprep.subr.mxu0 0.0
    %49 = vmatpush1.msra.mxu0 0.0
    %50 = vmatprep.subr.mxu0 0.0
    %51 = vmatpush1.msra.mxu0 0.0
    %52 = vmatprep.subr.mxu0 0.0
    %53 = vmatpush1.msra.mxu0 0.0
    %54 = vmatprep.subr.mxu0 0.0
    %55 = vmatpush1.msra.mxu0 0.0
    %56 = vmatprep.subr.mxu0 0.0
    %57 = vmatpush1.msra.mxu0 0.0
    %58 = vmatprep.subr.mxu0 0.0
    %59 = vmatpush1.msra.mxu0 0.0
    %60 = vmatprep.subr.mxu0 0.0
    %61 = vmatpush1.msra.mxu0 0.0
    %62 = vmatprep.subr.mxu0 0.0
    %63 = vmatpush1.msra.mxu0 0.0
    %64 = vmatprep.subr.mxu0 0.0
    %65 = vmatpush1.msra.mxu0 0.0
    %66 = vmatprep.subr.mxu0 0.0
    %67 = vmatpush1.msra.mxu0 %v33
    %68 = vmatprep.subr.mxu0 0.0
    %69 = vmatpush1.msra.mxu0 %v32
    %70 = vmatprep.subr.mxu0 0.0
    %71 = vmatpush2.msra.mxu0 0.0
    %72 = vmatprep.subr.mxu0 0.0
    %73 = vmatpush2.msra.mxu0 0.0
    %74 = vmatprep.subr.mxu0 0.0
    %75 = vmatpush2.msra.mxu0 0.0
    %76 = vmatprep.subr.mxu0 0.0
    %77 = vmatpush2.msra.mxu0 0.0
    %78 = vmatprep.subr.mxu0 0.0
    %79 = vmatpush2.msra.mxu0 0.0
    %80 = vmatprep.subr.mxu0 0.0
    %81 = vmatpush2.msra.mxu0 0.0
    %82 = vmatprep.subr.mxu0 0.0
    %83 = vmatpush2.msra.mxu0 0.0
    %84 = vmatprep.subr.mxu0 0.0
    %85 = vmatpush2.msra.mxu0 0.0
    %86 = vmatprep.subr.mxu0 0.0
    %87 = vmatpush2.msra.mxu0 0.0
    %88 = vmatprep.subr.mxu0 0.0
    %89 = vmatpush2.msra.mxu0 0.0
    %90 = vmatprep.subr.mxu0 0.0
    %91 = vmatpush2.msra.mxu0 0.0
    %92 = vmatprep.subr.mxu0 0.0
    %93 = vmatpush2.msra.mxu0 0.0
    %94 = vmatprep.subr.mxu0 0.0
    %95 = vmatpush2.msra.mxu0 0.0
    %96 = vmatprep.subr.mxu0 0.0
    %97 = vmatpush2.msra.mxu0 0.0
    %98 = vmatprep.subr.mxu0 0.0
    %99 = vmatpush2.msra.mxu0 0.0
    %100 = vmatprep.subr.mxu0 0.0
    %101 = vmatpush2.msra.mxu0 0.0
    %102 = vmatprep.mubr.f32.mxu0 0.0
    %103 = vmatmul.mubr.f32.gmra.mxu0 %v36
    %v104 = vpop.f32.mrf.mxu0
    %v105 = vadd.f32 0.0, %v104
    %v106 = vpop.f32.mrf.mxu0
    %107 = vdwg.mxu0
    %v109 = vsel %vm34, %v28, 0
    %111 = vmatprep.subr.mxu0 0.0
    %112 = vmatpush1.msra.mxu0 0.0
    %113 = vmatprep.subr.mxu0 0.0
    %114 = vmatpush1.msra.mxu0 0.0
    %115 = vmatprep.subr.mxu0 0.0
    %116 = vmatpush1.msra.mxu0 0.0
    %117 = vmatprep.subr.mxu0 0.0
    %118 = vmatpush1.msra.mxu0 0.0
    %119 = vmatprep.subr.mxu0 0.0
    %120 = vmatpush1.msra.mxu0 0.0
    %121 = vmatprep.subr.mxu0 0.0
    %122 = vmatpush1.msra.mxu0 0.0
    %123 = vmatprep.subr.mxu0 0.0
    %124 = vmatpush1.msra.mxu0 0.0
    %125 = vmatprep.subr.mxu0 0.0
    %126 = vmatpush1.msra.mxu0 0.0
    %127 = vmatprep.subr.mxu0 0.0
    %128 = vmatpush1.msra.mxu0 0.0
    %129 = vmatprep.subr.mxu0 0.0
    %130 = vmatpush1.msra.mxu0 0.0
    %131 = vmatprep.subr.mxu0 0.0
    %132 = vmatpush1.msra.mxu0 0.0
    %133 = vmatprep.subr.mxu0 0.0
    %134 = vmatpush1.msra.mxu0 0.0
    %135 = vmatprep.subr.mxu0 0.0
    %136 = vmatpush1.msra.mxu0 0.0
    %137 = vmatprep.subr.mxu0 0.0
    %138 = vmatpush1.msra.mxu0 0.0
    %139 = vmatprep.subr.mxu0 0.0
    %140 = vmatpush1.msra.mxu0 %v30
    %141 = vmatprep.subr.mxu0 0.0
    %142 = vmatpush1.msra.mxu0 %v29
    %143 = vmatprep.subr.mxu0 0.0
    %144 = vmatpush2.msra.mxu0 0.0
    %145 = vmatprep.subr.mxu0 0.0
    %146 = vmatpush2.msra.mxu0 0.0
    %147 = vmatprep.subr.mxu0 0.0
    %148 = vmatpush2.msra.mxu0 0.0
    %149 = vmatprep.subr.mxu0 0.0
    %150 = vmatpush2.msra.mxu0 0.0
    %151 = vmatprep.subr.mxu0 0.0
    %152 = vmatpush2.msra.mxu0 0.0
    %153 = vmatprep.subr.mxu0 0.0
    %154 = vmatpush2.msra.mxu0 0.0
    %155 = vmatprep.subr.mxu0 0.0
    %156 = vmatpush2.msra.mxu0 0.0
    %157 = vmatprep.subr.mxu0 0.0
    %158 = vmatpush2.msra.mxu0 0.0
    %159 = vmatprep.subr.mxu0 0.0
    %160 = vmatpush2.msra.mxu0 0.0
    %161 = vmatprep.subr.mxu0 0.0
    %162 = vmatpush2.msra.mxu0 0.0
    %163 = vmatprep.subr.mxu0 0.0
    %164 = vmatpush2.msra.mxu0 0.0
    %165 = vmatprep.subr.mxu0 0.0
    %166 = vmatpush2.msra.mxu0 0.0
    %167 = vmatprep.subr.mxu0 0.0
    %168 = vmatpush2.msra.mxu0 0.0
    %169 = vmatprep.subr.mxu0 0.0
    %170 = vmatpush2.msra.mxu0 0.0
    %171 = vmatprep.subr.mxu0 0.0
    %172 = vmatpush2.msra.mxu0 0.0
    %173 = vmatprep.subr.mxu0 0.0
    %174 = vmatpush2.msra.mxu0 0.0
    %175 = vmatprep.mubr.f32.mxu0 0.0
    %176 = vmatmul.mubr.f32.gmra.mxu0 %v109
    %v177 = vpop.f32.mrf.mxu0
    %v178 = vadd.f32 %v105, %v177
    %v179 = vpop.f32.mrf.mxu0
    %180 = vdwg.mxu0
    %v181 = vld [vmem:[%s4] sm:$0x1]
    %v183 = vlaneseq
    %v184 = vshrl.u32 %v183, 7
    %v185 = vsub.s32 0, %v184
    %v186 = vrot.slane %v181, %v185
    %v188 = vadd.f32 %v178, %v186
    %v189 = vmax.f32 %v188, 0.0
    %v190 = vld [vmem:[%s5] sm:$0xff]
    %v191 = vld [vmem:[%s5 + $0x8] sm:$0xff]
    %v192 = vld [vmem:[%s5 + $0x10] sm:$0xff]
    %v193 = vld [vmem:[%s5 + $0x18] sm:$0xff]
    %v194 = vld [vmem:[%s5 + $0x20] sm:$0xff]
    %v195 = vld [vmem:[%s5 + $0x28] sm:$0xff]
    %v196 = vld [vmem:[%s5 + $0x30] sm:$0xff]
    %v197 = vld [vmem:[%s5 + $0x38] sm:$0xff]
    %v198 = vld [vmem:[%s5 + $0x40] sm:$0xff]
    %v199 = vld [vmem:[%s5 + $0x48] sm:$0xff]
    %v200 = vld [vmem:[%s5 + $0x50] sm:$0xff]
    %v201 = vld [vmem:[%s5 + $0x58] sm:$0xff]
    %v202 = vld [vmem:[%s5 + $0x60] sm:$0xff]
    %v203 = vld [vmem:[%s5 + $0x68] sm:$0xff]
    %v204 = vld [vmem:[%s5 + $0x70] sm:$0xff]
    %v205 = vld [vmem:[%s5 + $0x78] sm:$0xff]
    %v206 = vld [vmem:[%s6] sm:$0x1]
    %v208 = vlaneseq
    %v209 = vshrl.u32 %v208, 7
    %v210 = vsub.s32 0, %v209
    %v211 = vrot.slane %v206, %v210
    %213 = vmatprep.subr.mxu0 0.0
    %214 = vmatpush1.msra.mxu0 %v205
    %215 = vmatprep.subr.mxu0 0.0
    %216 = vmatpush1.msra.mxu0 %v204
    %217 = vmatprep.subr.mxu0 0.0
    %218 = vmatpush1.msra.mxu0 %v203
    %219 = vmatprep.subr.mxu0 0.0
    %220 = vmatpush1.msra.mxu0 %v202
    %221 = vmatprep.subr.mxu0 0.0
    %222 = vmatpush1.msra.mxu0 %v201
    %223 = vmatprep.subr.mxu0 0.0
    %224 = vmatpush1.msra.mxu0 %v200
    %225 = vmatprep.subr.mxu0 0.0
    %226 = vmatpush1.msra.mxu0 %v199
    %227 = vmatprep.subr.mxu0 0.0
    %228 = vmatpush1.msra.mxu0 %v198
    %229 = vmatprep.subr.mxu0 0.0
    %230 = vmatpush1.msra.mxu0 %v197
    %231 = vmatprep.subr.mxu0 0.0
    %232 = vmatpush1.msra.mxu0 %v196
    %233 = vmatprep.subr.mxu0 0.0
    %234 = vmatpush1.msra.mxu0 %v195
    %235 = vmatprep.subr.mxu0 0.0
    %236 = vmatpush1.msra.mxu0 %v194
    %237 = vmatprep.subr.mxu0 0.0
    %238 = vmatpush1.msra.mxu0 %v193
    %239 = vmatprep.subr.mxu0 0.0
    %240 = vmatpush1.msra.mxu0 %v192
    %241 = vmatprep.subr.mxu0 0.0
    %242 = vmatpush1.msra.mxu0 %v191
    %243 = vmatprep.subr.mxu0 0.0
    %244 = vmatpush1.msra.mxu0 %v190
    %245 = vmatprep.subr.mxu0 0.0
    %246 = vmatpush2.msra.mxu0 0.0
    %247 = vmatprep.subr.mxu0 0.0
    %248 = vmatpush2.msra.mxu0 0.0
    %249 = vmatprep.subr.mxu0 0.0
    %250 = vmatpush2.msra.mxu0 0.0
    %251 = vmatprep.subr.mxu0 0.0
    %252 = vmatpush2.msra.mxu0 0.0
    %253 = vmatprep.subr.mxu0 0.0
    %254 = vmatpush2.msra.mxu0 0.0
    %255 = vmatprep.subr.mxu0 0.0
    %256 = vmatpush2.msra.mxu0 0.0
    %257 = vmatprep.subr.mxu0 0.0
    %258 = vmatpush2.msra.mxu0 0.0
    %259 = vmatprep.subr.mxu0 0.0
    %260 = vmatpush2.msra.mxu0 0.0
    %261 = vmatprep.subr.mxu0 0.0
    %262 = vmatpush2.msra.mxu0 0.0
    %263 = vmatprep.subr.mxu0 0.0
    %264 = vmatpush2.msra.mxu0 0.0
    %265 = vmatprep.subr.mxu0 0.0
    %266 = vmatpush2.msra.mxu0 0.0
    %267 = vmatprep.subr.mxu0 0.0
    %268 = vmatpush2.msra.mxu0 0.0
    %269 = vmatprep.subr.mxu0 0.0
    %270 = vmatpush2.msra.mxu0 0.0
    %271 = vmatprep.subr.mxu0 0.0
    %272 = vmatpush2.msra.mxu0 0.0
    %273 = vmatprep.subr.mxu0 0.0
    %274 = vmatpush2.msra.mxu0 0.0
    %275 = vmatprep.subr.mxu0 0.0
    %276 = vmatpush2.msra.mxu0 0.0
    %277 = vmatprep.mubr.f32.mxu0 0.0
    %278 = vmatmul.mubr.f32.gmra.mxu0 %v189
    %v279 = vpop.f32.mrf.mxu0
    %v280 = vadd.f32 %v211, %v279
    %v281 = vpop.f32.mrf.mxu0
    %282 = vdwg.mxu0
    %vm283 = vcmask 80896
    %284 = vst.msk [vmem:[#allocation2] sm:$0xff] %vm283, %v280
    // Predicated region
    $region30: #{classifier_forward.1} parent=1 // pred_check
      _
    $region31: #{classifier_forward.1} parent=1 // pred_check_branch
      %286 = sbr.rel (0) target = $region33
    $region32: #{classifier_forward.1} parent=1 // pred_region
      %s288 = ssub.s32 128, 128
      %289 = vsyncadd [#allocation3], %s288
      %s291 = sshll.u32 [#allocation2], 4
      %s292 = int_to_ptr.vmem [resolvable:$true] %s291
      %294 = dma.vmem_to_hbm [thread:$0]  %s292, 128, %s7, [#allocation3]
    $region33: #{classifier_forward.1} parent=1 // pred_fallthru
      _
    // Predicated region
    $region34: #{classifier_forward.1} parent=1 // pred_check
      _
    $region35: #{classifier_forward.1} parent=1 // pred_check_branch
      %296 = sbr.rel (0) target = $region37
    $region36: #{classifier_forward.1} parent=1 // pred_region
      %297 = dma.done [#allocation3], 128
    $region37: #{classifier_forward.1} parent=1 // pred_fallthru
      _
    %298 = vsyncpa [#allocation3], 1

</llo_original>
